<compile_context>
chip_gen: v5e
topology: v5e:2x2
jax: 0.10.0
libtpu: 0.0.40
codegen_flags: <defaults>
</compile_context>

<pallas_src>
import jax
import jax.numpy as jnp
from jax import lax
from jax.experimental import pallas as pl
from jax.experimental.pallas import tpu as pltpu


def _round_up(n: int, m: int) -> int:
    return ((n + m - 1) // m) * m


def _cdiv(a: int, b: int) -> int:
    return -(-a // b)


def _mlp_kernel(x_ref,
                w1_ref, b1_ref,
                w2_ref, b2_ref,
                w3_ref, b3_ref,
                wc_ref, bc_ref,
                out_ref):
    # x_ref: [tb, F] (caller dtype, f32). Weights: torch [out, in], bf16.
    # Biases: [out, 1] f32 columns. wc_ref: [4, 1] f32 column. out_ref: [8, tb] f32.
    xb = x_ref[...].astype(jnp.bfloat16)          # cast on VPU; kernel is DMA-bound

    # Layer 1: contract x's feature (last) axis against W1's last axis so the
    # result lands batch-on-lanes: h = [h1, tb].  No wrapper-side transpose of x.
    h = jnp.tanh(
        lax.dot_general(w1_ref[...], xb,
                        dimension_numbers=(((1,), (1,)), ((), ())),
                        preferred_element_type=jnp.float32)
        + b1_ref[...])

    # Layers 2-3: bf16 operands, f32 accumulation (keeps the MXU in bf16 mode and
    # halves intermediate VMEM).
    h = jnp.tanh(jnp.dot(w2_ref[...], h.astype(jnp.bfloat16),
                         preferred_element_type=jnp.float32) + b2_ref[...])
    h = jnp.tanh(jnp.dot(w3_ref[...], h.astype(jnp.bfloat16),
                         preferred_element_type=jnp.float32) + b3_ref[...])   # [4, tb]

    # Classifier Linear(4, 1): only 4 terms -> VPU broadcast-mul + sublane reduce
    # (avoids a degenerate M=1 MXU matmul), then numerically-stable sigmoid with
    # EUP exp + approx reciprocal (both on otherwise-idle units).
    z = jnp.sum(wc_ref[...] * h, axis=0, keepdims=True) + bc_ref[...]         # [1, tb]
    e = jnp.exp(-jnp.abs(z))                                                  # never overflows
    p = jnp.where(z >= 0, 1.0, e) * pl.reciprocal(1.0 + e, approx=True)

    tb = h.shape[1]
    out_ref[0:4, :] = h                                   # features (rows 0..3)
    out_ref[4:5, :] = p                                    # sigmoid prob (row 4)
    out_ref[5:8, :] = jnp.zeros((3, tb), jnp.float32)      # deterministic pad rows


def mlp_forward(x, params, *, tile_b=4096):
    """Pallas forward matching MLP.forward (30 < in_features <= 60 branch).

    Returns (features [B, 4], prob [B])."""
    (w1, b1), (w2, b2), (w3, b3), (wc, bc) = params   # torch layout: W [out, in]
    B, F = x.shape
    h1, h2, h3 = w1.shape[0], w2.shape[0], w3.shape[0]

    tile_b = max(128, _round_up(tile_b, 128))         # lane-aligned tiles only

    if B <= tile_b:
        # Moderate batch: at most two lane-aligned tiles (keeps both v7x
        # TensorCores busy) and pad x so every block is fully in bounds
        # (the pad copy is negligible at this size).
        tb = _round_up(B, 128) if B <= 128 else _round_up(_cdiv(B, 2), 128)
        grid = _cdiv(B, tb)
        b_pad = grid * tb
        if b_pad != B:
            x = jnp.pad(x, ((0, b_pad - B), (0, 0)))
    else:
        # Large batch: stream full tiles straight from the caller's [B, F] layout —
        # no wrapper-side cast / transpose / pad materialization of x.  A
        # non-divisible tail becomes a partial final block (masked by Pallas);
        # the affected padded output columns are sliced away below.
        tb = tile_b
        grid = _cdiv(B, tb)
        b_pad = grid * tb

    def bf16(w):
        return w.astype(jnp.bfloat16)

    def col(b):   # bias as an [out, 1] f32 column (lane broadcast hoisted)
        return b.reshape(-1, 1).astype(jnp.float32)

    resident = lambda i: (0, 0)    # same block every step -> weights stay in VMEM

    # Advisory cost for XLA's scheduler: cheap, memory-bound op.
    flops = int(2 * b_pad * (F * h1 + h1 * h2 + h2 * h3 + h3))
    transcendentals = int(b_pad * (h1 + h2 + h3 + 1))
    bytes_accessed = int(b_pad * F * 4 + 8 * b_pad * 4
                         + 4 * (w1.size + w2.size + w3.size + wc.size))

    # VMEM budget: double-buffered x tile + double-buffered packed output +
    # activation intermediates, with 2x headroom (v5e scoped default is 16 MiB).
    vmem_need = 2 * tb * F * 4 + 2 * 8 * tb * 4 + 6 * h1 * tb * 4
    vmem_limit = int(min(100 * 2**20, max(32 * 2**20, 2 * vmem_need)))

    out = pl.pallas_call(
        _mlp_kernel,
        grid=(grid,),
        out_shape=jax.ShapeDtypeStruct((8, b_pad), jnp.float32),
        in_specs=[
            pl.BlockSpec((tb, F), lambda i: (i, 0)),        # x: native layout, one contiguous DMA/step
            pl.BlockSpec(w1.shape, resident), pl.BlockSpec((h1, 1), resident),
            pl.BlockSpec(w2.shape, resident), pl.BlockSpec((h2, 1), resident),
            pl.BlockSpec(w3.shape, resident), pl.BlockSpec((h3, 1), resident),
            pl.BlockSpec((h3, 1), resident), pl.BlockSpec((1, 1), resident),
        ],
        out_specs=pl.BlockSpec((8, tb), lambda i: (0, i)),   # single lane-dense writeback
        compiler_params=pltpu.CompilerParams(
            dimension_semantics=("parallel",),               # shard batch tiles on v7x's 2 TCs
            vmem_limit_bytes=vmem_limit),
        cost_estimate=pl.CostEstimate(flops=flops,
                                      transcendentals=transcendentals,
                                      bytes_accessed=bytes_accessed),
    )(x,
      bf16(w1), col(b1),
      bf16(w2), col(b2),
      bf16(w3), col(b3),
      wc.reshape(-1, 1).astype(jnp.float32), col(bc))

    feat = out[:4, :B].T      # back to [B, 4] (tiny wrapper-side transpose)
    prob = out[4, :B]         # squeeze(-1)
    return feat, prob


def init_params(key, in_features):
    """torch.nn.Linear-style init (U[-1/sqrt(fan_in), +1/sqrt(fan_in)]), W in [out, in].

    30 < in_features <= 60 branch:
      Linear(in, 32) -> Tanh -> Linear(32, 16) -> Tanh -> Linear(16, 4) -> Tanh
      classifier: Linear(4, 1) -> Sigmoid
    """
    assert 30 < in_features <= 60, "this script instantiates the 30<in<=60 branch"
    dims = [(in_features, 32), (32, 16), (16, 4), (4, 1)]
    params = []
    for fan_in, fan_out in dims:
        key, kw, kb = jax.random.split(key, 3)
        bound = 1.0 / jnp.sqrt(jnp.float32(fan_in))
        w = jax.random.uniform(kw, (fan_out, fan_in), jnp.float32,
                               minval=-bound, maxval=bound)
        b = jax.random.uniform(kb, (fan_out,), jnp.float32,
                               minval=-bound, maxval=bound)
        params.append((w, b))
    return tuple(params)


def reference_forward(x, params):
    """Pure-JAX reference mirroring the kernel's bf16 operand / f32 accum choices."""
    (w1, b1), (w2, b2), (w3, b3), (wc, bc) = params
    h = jnp.tanh(jnp.dot(x.astype(jnp.bfloat16), w1.astype(jnp.bfloat16).T,
                         preferred_element_type=jnp.float32) + b1)
    h = jnp.tanh(jnp.dot(h.astype(jnp.bfloat16), w2.astype(jnp.bfloat16).T,
                         preferred_element_type=jnp.float32) + b2)
    h = jnp.tanh(jnp.dot(h.astype(jnp.bfloat16), w3.astype(jnp.bfloat16).T,
                         preferred_element_type=jnp.float32) + b3)
    logits = (jnp.dot(h, wc.T, preferred_element_type=jnp.float32) + bc
              ).reshape(x.shape[0])
    return h, jax.nn.sigmoid(logits)


if __name__ == "__main__":
    in_features = 32   # picks the 30 < in_features <= 60 branch of MLP.__init__

    key = jax.random.PRNGKey(0)
    key, kx_small, kx_big = jax.random.split(key, 3)
    params = init_params(key, in_features)

    fwd = jax.jit(mlp_forward)

    # batch=8: single-tile path; batch=384: two grid steps (pipeline + both v7x TCs).
    for batch, kx in ((8, kx_small), (384, kx_big)):
        x = jax.random.normal(kx, (batch, in_features), jnp.float32)
        feat, prob = fwd(x, params)
        jax.block_until_ready((feat, prob))

        feat_ref, prob_ref = reference_forward(x, params)
        assert feat.shape == (batch, 4) and prob.shape == (batch,)
        assert jnp.allclose(feat, feat_ref, atol=5e-3, rtol=5e-3), "feat mismatch"
        assert jnp.allclose(prob, prob_ref, atol=5e-3, rtol=5e-3), "prob mismatch"

    print("KERNEL_OK")
</pallas_src>

<mosaic_0001>
module attributes {stable_mosaic.version = 11 : i64} {
  func.func @_mlp_kernel(%arg0: i32, %arg1: memref<128x32xf32, #tpu.memory_space<vmem>>, %arg2: memref<32x32xbf16, #tpu.memory_space<vmem>>, %arg3: memref<32x1xf32, #tpu.memory_space<vmem>>, %arg4: memref<16x32xbf16, #tpu.memory_space<vmem>>, %arg5: memref<16x1xf32, #tpu.memory_space<vmem>>, %arg6: memref<4x16xbf16, #tpu.memory_space<vmem>>, %arg7: memref<4x1xf32, #tpu.memory_space<vmem>>, %arg8: memref<4x1xf32, #tpu.memory_space<vmem>>, %arg9: memref<1x1xf32, #tpu.memory_space<vmem>>, %arg10: memref<8x128xf32, #tpu.memory_space<vmem>>) attributes {dimension_semantics = [#tpu.dimension_semantics<parallel>], iteration_bounds = array<i64: 1>, scalar_prefetch = 0 : i64, scratch_operands = 0 : i64, tpu.core_type = #tpu.core_type<tc>, window_params = [{transform_indices = @transform_0, window_bounds = array<i64: 128, 32>}, {pipeline_mode = #tpu.pipeline_mode<synchronous>, transform_indices = @transform_1, window_bounds = array<i64: 32, 32>}, {pipeline_mode = #tpu.pipeline_mode<synchronous>, transform_indices = @transform_2, window_bounds = array<i64: 32, 1>}, {pipeline_mode = #tpu.pipeline_mode<synchronous>, transform_indices = @transform_3, window_bounds = array<i64: 16, 32>}, {pipeline_mode = #tpu.pipeline_mode<synchronous>, transform_indices = @transform_4, window_bounds = array<i64: 16, 1>}, {pipeline_mode = #tpu.pipeline_mode<synchronous>, transform_indices = @transform_5, window_bounds = array<i64: 4, 16>}, {pipeline_mode = #tpu.pipeline_mode<synchronous>, transform_indices = @transform_6, window_bounds = array<i64: 4, 1>}, {pipeline_mode = #tpu.pipeline_mode<synchronous>, transform_indices = @transform_7, window_bounds = array<i64: 4, 1>}, {pipeline_mode = #tpu.pipeline_mode<synchronous>, transform_indices = @transform_8, window_bounds = array<i64: 1, 1>}, {transform_indices = @transform_9, window_bounds = array<i64: 8, 128>}]} {
    %c0 = arith.constant 0 : index
    %c0_0 = arith.constant 0 : index
    %0 = vector.load %arg1[%c0, %c0_0] : memref<128x32xf32, #tpu.memory_space<vmem>>, vector<128x32xf32>
    %1 = arith.truncf %0 : vector<128x32xf32> to vector<128x32xbf16>
    %c0_1 = arith.constant 0 : index
    %c0_2 = arith.constant 0 : index
    %2 = vector.load %arg2[%c0_1, %c0_2] : memref<32x32xbf16, #tpu.memory_space<vmem>>, vector<32x32xbf16>
    %cst = arith.constant dense<0.000000e+00> : vector<32x128xf32>
    %3 = tpu.matmul %2, %1, %cst {dimension_numbers = #tpu.dot_dimension_numbers<[1], [1], [0], [0], [0, 0, 1, 0], [], []>} : vector<32x32xbf16>, vector<128x32xbf16>, vector<32x128xf32> -> vector<32x128xf32>
    %c0_3 = arith.constant 0 : index
    %c0_4 = arith.constant 0 : index
    %4 = vector.load %arg3[%c0_3, %c0_4] : memref<32x1xf32, #tpu.memory_space<vmem>>, vector<32x1xf32>
    %5 = vector.broadcast %4 : vector<32x1xf32> to vector<32x128xf32>
    %6 = arith.addf %3, %5 : vector<32x128xf32>
    %7 = math.tanh %6 : vector<32x128xf32>
    %c0_5 = arith.constant 0 : index
    %c0_6 = arith.constant 0 : index
    %8 = vector.load %arg4[%c0_5, %c0_6] : memref<16x32xbf16, #tpu.memory_space<vmem>>, vector<16x32xbf16>
    %9 = arith.truncf %7 : vector<32x128xf32> to vector<32x128xbf16>
    %cst_7 = arith.constant dense<0.000000e+00> : vector<16x128xf32>
    %10 = tpu.matmul %8, %9, %cst_7 {dimension_numbers = #tpu.dot_dimension_numbers<[1], [0], [0], [1], [0, 0, 1, 1], [], []>} : vector<16x32xbf16>, vector<32x128xbf16>, vector<16x128xf32> -> vector<16x128xf32>
    %c0_8 = arith.constant 0 : index
    %c0_9 = arith.constant 0 : index
    %11 = vector.load %arg5[%c0_8, %c0_9] : memref<16x1xf32, #tpu.memory_space<vmem>>, vector<16x1xf32>
    %12 = vector.broadcast %11 : vector<16x1xf32> to vector<16x128xf32>
    %13 = arith.addf %10, %12 : vector<16x128xf32>
    %14 = math.tanh %13 : vector<16x128xf32>
    %c0_10 = arith.constant 0 : index
    %c0_11 = arith.constant 0 : index
    %15 = vector.load %arg6[%c0_10, %c0_11] : memref<4x16xbf16, #tpu.memory_space<vmem>>, vector<4x16xbf16>
    %16 = arith.truncf %14 : vector<16x128xf32> to vector<16x128xbf16>
    %cst_12 = arith.constant dense<0.000000e+00> : vector<4x128xf32>
    %17 = tpu.matmul %15, %16, %cst_12 {dimension_numbers = #tpu.dot_dimension_numbers<[1], [0], [0], [1], [0, 0, 1, 1], [], []>} : vector<4x16xbf16>, vector<16x128xbf16>, vector<4x128xf32> -> vector<4x128xf32>
    %c0_13 = arith.constant 0 : index
    %c0_14 = arith.constant 0 : index
    %18 = vector.load %arg7[%c0_13, %c0_14] : memref<4x1xf32, #tpu.memory_space<vmem>>, vector<4x1xf32>
    %19 = vector.broadcast %18 : vector<4x1xf32> to vector<4x128xf32>
    %20 = arith.addf %17, %19 : vector<4x128xf32>
    %21 = math.tanh %20 : vector<4x128xf32>
    %c0_15 = arith.constant 0 : index
    %c0_16 = arith.constant 0 : index
    %22 = vector.load %arg8[%c0_15, %c0_16] : memref<4x1xf32, #tpu.memory_space<vmem>>, vector<4x1xf32>
    %23 = vector.broadcast %22 : vector<4x1xf32> to vector<4x128xf32>
    %24 = arith.mulf %23, %21 : vector<4x128xf32>
    %cst_17 = arith.constant dense<0.000000e+00> : vector<128xf32>
    %25 = vector.multi_reduction <add>, %24, %cst_17 [0] : vector<4x128xf32> to vector<128xf32>
    %26 = vector.shape_cast %25 : vector<128xf32> to vector<1x128xf32>
    %c0_18 = arith.constant 0 : index
    %c0_19 = arith.constant 0 : index
    %27 = vector.load %arg9[%c0_18, %c0_19] : memref<1x1xf32, #tpu.memory_space<vmem>>, vector<1x1xf32>
    %28 = vector.broadcast %27 : vector<1x1xf32> to vector<1x128xf32>
    %29 = arith.addf %26, %28 : vector<1x128xf32>
    %30 = math.absf %29 : vector<1x128xf32>
    %cst_20 = arith.constant 0.000000e+00 : f32
    %31 = vector.broadcast %cst_20 : f32 to vector<1x128xf32>
    %32 = arith.subf %31, %30 : vector<1x128xf32>
    %33 = math.exp %32 : vector<1x128xf32>
    %cst_21 = arith.constant 0.000000e+00 : f32
    %34 = vector.broadcast %cst_21 : f32 to vector<1x128xf32>
    %35 = arith.cmpf oge, %29, %34 : vector<1x128xf32>
    %cst_22 = arith.constant 1.000000e+00 : f32
    %36 = vector.broadcast %cst_22 : f32 to vector<1x128xf32>
    %37 = arith.select %35, %36, %33 : vector<1x128xi1>, vector<1x128xf32>
    %cst_23 = arith.constant 1.000000e+00 : f32
    %38 = vector.broadcast %cst_23 : f32 to vector<1x128xf32>
    %39 = arith.addf %38, %33 : vector<1x128xf32>
    %40 = tpu.reciprocal %39 {approx = true} : vector<1x128xf32> -> vector<1x128xf32>
    %41 = arith.mulf %37, %40 : vector<1x128xf32>
    %c0_24 = arith.constant 0 : index
    %c0_25 = arith.constant 0 : index
    %42 = vector.load %arg10[%c0_24, %c0_25] : memref<8x128xf32, #tpu.memory_space<vmem>>, vector<4x128xf32>
    tpu.vector_store %arg10[%c0_24, %c0_25], %21 {strides = array<i32>} : memref<8x128xf32, #tpu.memory_space<vmem>>, vector<4x128xf32>,
    %c4 = arith.constant 4 : index
    %c0_26 = arith.constant 0 : index
    %43 = vector.load %arg10[%c4, %c0_26] : memref<8x128xf32, #tpu.memory_space<vmem>>, vector<1x128xf32>
    tpu.vector_store %arg10[%c4, %c0_26], %41 {strides = array<i32>} : memref<8x128xf32, #tpu.memory_space<vmem>>, vector<1x128xf32>,
    %cst_27 = arith.constant 0.000000e+00 : f32
    %44 = vector.broadcast %cst_27 : f32 to vector<3x128xf32>
    %c5 = arith.constant 5 : index
    %c0_28 = arith.constant 0 : index
    %45 = vector.load %arg10[%c5, %c0_28] : memref<8x128xf32, #tpu.memory_space<vmem>>, vector<3x128xf32>
    tpu.vector_store %arg10[%c5, %c0_28], %44 {strides = array<i32>} : memref<8x128xf32, #tpu.memory_space<vmem>>, vector<3x128xf32>,
    return
  }
  func.func @transform_0(%arg0: i32) -> (i32, i32) {
    %c0_i32 = arith.constant 0 : i32
    %c0_i32_0 = arith.constant 0 : i32
    return %arg0, %c0_i32 : i32, i32
  }
  func.func @transform_1(%arg0: i32) -> (i32, i32) {
    %c0_i32 = arith.constant 0 : i32
    %c0_i32_0 = arith.constant 0 : i32
    %c0_i32_1 = arith.constant 0 : i32
    return %c0_i32, %c0_i32_0 : i32, i32
  }
  func.func @transform_2(%arg0: i32) -> (i32, i32) {
    %c0_i32 = arith.constant 0 : i32
    %c0_i32_0 = arith.constant 0 : i32
    %c0_i32_1 = arith.constant 0 : i32
    return %c0_i32, %c0_i32_0 : i32, i32
  }
  func.func @transform_3(%arg0: i32) -> (i32, i32) {
    %c0_i32 = arith.constant 0 : i32
    %c0_i32_0 = arith.constant 0 : i32
    %c0_i32_1 = arith.constant 0 : i32
    return %c0_i32, %c0_i32_0 : i32, i32
  }
  func.func @transform_4(%arg0: i32) -> (i32, i32) {
    %c0_i32 = arith.constant 0 : i32
    %c0_i32_0 = arith.constant 0 : i32
    %c0_i32_1 = arith.constant 0 : i32
    return %c0_i32, %c0_i32_0 : i32, i32
  }
  func.func @transform_5(%arg0: i32) -> (i32, i32) {
    %c0_i32 = arith.constant 0 : i32
    %c0_i32_0 = arith.constant 0 : i32
    %c0_i32_1 = arith.constant 0 : i32
    return %c0_i32, %c0_i32_0 : i32, i32
  }
  func.func @transform_6(%arg0: i32) -> (i32, i32) {
    %c0_i32 = arith.constant 0 : i32
    %c0_i32_0 = arith.constant 0 : i32
    %c0_i32_1 = arith.constant 0 : i32
    return %c0_i32, %c0_i32_0 : i32, i32
  }
  func.func @transform_7(%arg0: i32) -> (i32, i32) {
    %c0_i32 = arith.constant 0 : i32
    %c0_i32_0 = arith.constant 0 : i32
    %c0_i32_1 = arith.constant 0 : i32
    return %c0_i32, %c0_i32_0 : i32, i32
  }
  func.func @transform_8(%arg0: i32) -> (i32, i32) {
    %c0_i32 = arith.constant 0 : i32
    %c0_i32_0 = arith.constant 0 : i32
    %c0_i32_1 = arith.constant 0 : i32
    return %c0_i32, %c0_i32_0 : i32, i32
  }
  func.func @transform_9(%arg0: i32) -> (i32, i32) {
    %c0_i32 = arith.constant 0 : i32
    %c0_i32_0 = arith.constant 0 : i32
    return %c0_i32, %arg0 : i32, i32
  }
}

</mosaic_0001>

<llo_original>
// kernel: mlp_forward.1
$region0: #{mlp_forward.1}
  #allocation0 [shape = 'u32[]', space=smem, size = 0x4, offset = 0x4, fixed_abs, tag = 'smem constant byte address 0x4 - core index']
  #allocation1 [shape = 'u32[72,128]{1,0:T(1,128)}', space=vmem, size = 0x9000, scoped, tag = 'internal scratch']
  #allocation2 [shape = 'f32[1,1]{1,0:T(1,128)S(1)}', space=vmem, size = 0x200, scoped, tag = 'scoped memory for mlp_forward.1']
  %s0 = inlined_call_operand.vmem [shape: f32[128,32], index: 0, kind: input, shape index: {}]
  %s1 = inlined_call_operand.vmem [shape: bf16[32,32], index: 1, kind: input, shape index: {}]
  %s2 = inlined_call_operand.vmem [shape: f32[32,1], index: 2, kind: input, shape index: {}]
  %s3 = inlined_call_operand.vmem [shape: bf16[16,32], index: 3, kind: input, shape index: {}]
  %s4 = inlined_call_operand.vmem [shape: f32[16,1], index: 4, kind: input, shape index: {}]
  %s5 = inlined_call_operand.vmem [shape: bf16[4,16], index: 5, kind: input, shape index: {}]
  %s6 = inlined_call_operand.vmem [shape: f32[4,1], index: 6, kind: input, shape index: {}]
  %s7 = inlined_call_operand.vmem [shape: f32[4,1], index: 7, kind: input, shape index: {}]
  %s8 = inlined_call_operand.<no memory space> [shape: f32[1,1], index: 8, kind: input, shape index: {}]
  %s9 = inlined_call_operand.vmem [shape: f32[8,128], index: 9, kind: output, shape index: {}]
  %s10 = sld [smem:[#allocation0]]
  $region46: #{mlp_forward.1} parent=0
    _
  %s12 = ssub.s32 1, %s10
  %s13 = scalar_select 0, %s12, %s10
  %v14 = vstv %s8
  %15 = vst [vmem:[#allocation2] sm:$0x1] %v14
  // Predicated region
  $region2: #{mlp_forward.1} parent=0 // pred_check
    _
  $region3: #{mlp_forward.1} parent=0 // pred_check_branch
    %17 = sbr.rel (0) target = $region5
  $region4: #{mlp_forward.1} parent=0 // pred_region
    _
  $region5: #{mlp_forward.1} parent=0 // pred_fallthru
    _
  // Predicated region
  $region6: #{mlp_forward.1} parent=0 // pred_check
    _
  $region7: #{mlp_forward.1} parent=0 // pred_check_branch
    %19 = sbr.rel (0) target = $region9
  $region8: #{mlp_forward.1} parent=0 // pred_region
    _
  $region9: #{mlp_forward.1} parent=0 // pred_fallthru
    _
  // Predicated region
  $region10: #{mlp_forward.1} parent=0 // pred_check
    _
  $region11: #{mlp_forward.1} parent=0 // pred_check_branch
    %21 = sbr.rel (0) target = $region13
  $region12: #{mlp_forward.1} parent=0 // pred_region
    _
  $region13: #{mlp_forward.1} parent=0 // pred_fallthru
    _
  // Predicated region
  $region14: #{mlp_forward.1} parent=0 // pred_check
    _
  $region15: #{mlp_forward.1} parent=0 // pred_check_branch
    %23 = sbr.rel (0) target = $region17
  $region16: #{mlp_forward.1} parent=0 // pred_region
    _
  $region17: #{mlp_forward.1} parent=0 // pred_fallthru
    _
  // Predicated region
  $region18: #{mlp_forward.1} parent=0 // pred_check
    _
  $region19: #{mlp_forward.1} parent=0 // pred_check_branch
    %25 = sbr.rel (0) target = $region21
  $region20: #{mlp_forward.1} parent=0 // pred_region
    _
  $region21: #{mlp_forward.1} parent=0 // pred_fallthru
    _
  // Predicated region
  $region22: #{mlp_forward.1} parent=0 // pred_check
    _
  $region23: #{mlp_forward.1} parent=0 // pred_check_branch
    %27 = sbr.rel (0) target = $region25
  $region24: #{mlp_forward.1} parent=0 // pred_region
    _
  $region25: #{mlp_forward.1} parent=0 // pred_fallthru
    _
  // Predicated region
  $region26: #{mlp_forward.1} parent=0 // pred_check
    _
  $region27: #{mlp_forward.1} parent=0 // pred_check_branch
    %29 = sbr.rel (0) target = $region29
  $region28: #{mlp_forward.1} parent=0 // pred_region
    _
  $region29: #{mlp_forward.1} parent=0 // pred_fallthru
    _
  // Predicated region
  $region30: #{mlp_forward.1} parent=0 // pred_check
    _
  $region31: #{mlp_forward.1} parent=0 // pred_check_branch
    %31 = sbr.rel (0) target = $region33
  $region32: #{mlp_forward.1} parent=0 // pred_region
    _
  $region33: #{mlp_forward.1} parent=0 // pred_fallthru
    _
  // Predicated region
  $region34: #{mlp_forward.1} parent=0 // pred_check
    _
  $region35: #{mlp_forward.1} parent=0 // pred_check_branch
    %33 = sbr.rel (0) target = $region37
  $region36: #{mlp_forward.1} parent=0 // pred_region
    _
  $region37: #{mlp_forward.1} parent=0 // pred_fallthru
    _
  %v35 = vld [vmem:[%s0] sm:$0xff]
  %v36 = vld [vmem:[%s0 + $0x8] sm:$0xff]
  %v37 = vld [vmem:[%s0 + $0x10] sm:$0xff]
  %v38 = vld [vmem:[%s0 + $0x18] sm:$0xff]
  %v39 = vld [vmem:[%s0 + $0x20] sm:$0xff]
  %v40 = vld [vmem:[%s0 + $0x28] sm:$0xff]
  %v41 = vld [vmem:[%s0 + $0x30] sm:$0xff]
  %v42 = vld [vmem:[%s0 + $0x38] sm:$0xff]
  %v43 = vld [vmem:[%s0 + $0x40] sm:$0xff]
  %v44 = vld [vmem:[%s0 + $0x48] sm:$0xff]
  %v45 = vld [vmem:[%s0 + $0x50] sm:$0xff]
  %v46 = vld [vmem:[%s0 + $0x58] sm:$0xff]
  %v47 = vld [vmem:[%s0 + $0x60] sm:$0xff]
  %v48 = vld [vmem:[%s0 + $0x68] sm:$0xff]
  %v49 = vld [vmem:[%s0 + $0x70] sm:$0xff]
  %v50 = vld [vmem:[%s0 + $0x78] sm:$0xff]
  %v51 = vpack.c.bf16 %v36, %v35
  %v52 = vpack.c.bf16 %v38, %v37
  %v53 = vpack.c.bf16 %v40, %v39
  %v54 = vpack.c.bf16 %v42, %v41
  %v55 = vpack.c.bf16 %v44, %v43
  %v56 = vpack.c.bf16 %v46, %v45
  %v57 = vpack.c.bf16 %v48, %v47
  %v58 = vpack.c.bf16 %v50, %v49
  %v59 = vld [vmem:[%s1] sm:$0xf]
  %v60 = vld [vmem:[%s1 + $0x4] sm:$0xf]
  %v61 = vld [vmem:[%s1 + $0x8] sm:$0xf]
  %v62 = vld [vmem:[%s1 + $0xc] sm:$0xf]
  %v63 = vld [vmem:[%s2] sm:$0xff]
  %v64 = vld [vmem:[%s2 + $0x8] sm:$0xff]
  %v65 = vld [vmem:[%s2 + $0x10] sm:$0xff]
  %v66 = vld [vmem:[%s2 + $0x18] sm:$0xff]
  %68 = vset.pattern.permute.xlu0 0
  %69 = vperm.xlu0 %68, %v63
  %v70 = vpop.permute.xlu0 %69
  %73 = vset.pattern.permute.xlu0 0
  %74 = vperm.xlu0 %73, %v64
  %v75 = vpop.permute.xlu0 %74
  %78 = vset.pattern.permute.xlu0 0
  %79 = vperm.xlu0 %78, %v65
  %v80 = vpop.permute.xlu0 %79
  %83 = vset.pattern.permute.xlu0 0
  %84 = vperm.xlu0 %83, %v66
  %v85 = vpop.permute.xlu0 %84
  %v91 = vunpack.c.l.b16 %v59
  %v92 = vunpack.c.l.b16 %v60
  %v93 = vunpack.c.l.b16 %v61
  %v94 = vunpack.c.l.b16 %v62
  %v95 = vpack.c.b16 %v92, %v91
  %v96 = vpack.c.b16 %v94, %v93
  %vm97 = vcmask 261120
  %v99 = vsel %vm97, %v95, 0
  %v102 = vsel %vm97, %v96, 0
  %v105 = vsel %vm97, %v51, 0
  %v108 = vsel %vm97, %v52, 0
  %v111 = vsel %vm97, %v53, 0
  %v114 = vsel %vm97, %v54, 0
  %v117 = vsel %vm97, %v55, 0
  %v120 = vsel %vm97, %v56, 0
  %v123 = vsel %vm97, %v57, 0
  %v126 = vsel %vm97, %v58, 0
  %128 = vmatpush.bf16.xpose.msra.mxu0 %v126
  %129 = vmatpush.bf16.xpose.msra.mxu0 %v123
  %130 = vmatpush.bf16.xpose.msra.mxu0 %v120
  %131 = vmatpush.bf16.xpose.msra.mxu0 %v117
  %132 = vmatpush.bf16.xpose.msra.mxu0 %v114
  %133 = vmatpush.bf16.xpose.msra.mxu0 %v111
  %134 = vmatpush.bf16.xpose.msra.mxu0 %v108
  %135 = vmatpush.bf16.xpose.msra.mxu0 %v105
  %136 = vmatmul.bf16.gmra.mxu0 %v99
  %v137 = vpop.f32.mrf.mxu0
  %v138 = vadd.f32 %v70, %v137
  %v139 = vpop.f32.mrf.mxu0
  %v140 = vadd.f32 %v75, %v139
  %141 = vmatmul.bf16.gmra.mxu0 %v102
  %v142 = vpop.f32.mrf.mxu0
  %v143 = vadd.f32 %v80, %v142
  %v144 = vpop.f32.mrf.mxu0
  %v145 = vadd.f32 %v85, %v144
  %146 = vdwg.mxu0
  %v147 = vtanh.pop %v138
  %v148 = vtanh.pop %v140
  %v149 = vtanh.pop %v143
  %v150 = vtanh.pop %v145
  %v151 = vld [vmem:[%s3] sm:$0xf]
  %v152 = vld [vmem:[%s3 + $0x4] sm:$0xf]
  %v153 = vpack.c.bf16 %v148, %v147
  %v154 = vpack.c.bf16 %v150, %v149
  %v155 = vld [vmem:[%s4] sm:$0xff]
  %v156 = vld [vmem:[%s4 + $0x8] sm:$0xff]
  %158 = vset.pattern.permute.xlu0 0
  %159 = vperm.xlu0 %158, %v155
  %v160 = vpop.permute.xlu0 %159
  %163 = vset.pattern.permute.xlu0 0
  %164 = vperm.xlu0 %163, %v156
  %v165 = vpop.permute.xlu0 %164
  %v169 = vunpack.c.l.b16 %v151
  %v170 = vunpack.c.l.b16 %v152
  %v171 = vpack.c.b16 %v170, %v169
  %v173 = vsel %vm97, %v171, 0
  %175 = vmatpush.bf16.msra.mxu0 0
  %176 = vmatpush.bf16.msra.mxu0 0
  %177 = vmatpush.bf16.msra.mxu0 0
  %178 = vmatpush.bf16.msra.mxu0 0
  %179 = vmatpush.bf16.msra.mxu0 0
  %180 = vmatpush.bf16.msra.mxu0 0
  %181 = vmatpush.bf16.msra.mxu0 %v154
  %182 = vmatpush.bf16.msra.mxu0 %v153
  %183 = vmatmul.bf16.gmra.mxu0 %v173
  %v184 = vpop.f32.mrf.mxu0
  %v185 = vadd.f32 %v160, %v184
  %v186 = vpop.f32.mrf.mxu0
  %v187 = vadd.f32 %v165, %v186
  %188 = vdwg.mxu0
  %v189 = vtanh.pop %v185
  %v190 = vtanh.pop %v187
  %v191 = vld [vmem:[%s5] sm:$0x3]
  %v192 = vpack.c.bf16 %v190, %v189
  %v193 = vld [vmem:[%s6] sm:$0xf]
  %195 = vset.pattern.permute.xlu0 0
  %196 = vperm.xlu0 %195, %v193
  %v197 = vpop.permute.xlu0 %196
  %vm199 = vcmask 130048
  %v201 = vsel %vm199, %v191, 0
  %203 = vmatpush.bf16.msra.mxu0 0
  %204 = vmatpush.bf16.msra.mxu0 0
  %205 = vmatpush.bf16.msra.mxu0 0
  %206 = vmatpush.bf16.msra.mxu0 0
  %207 = vmatpush.bf16.msra.mxu0 0
  %208 = vmatpush.bf16.msra.mxu0 0
  %209 = vmatpush.bf16.msra.mxu0 0
  %210 = vmatpush.bf16.msra.mxu0 %v192
  %211 = vmatmul.bf16.gmra.mxu0 %v201
  %v212 = vpop.f32.mrf.mxu0
  %v213 = vadd.f32 %v197, %v212
  %v214 = vpop.f32.mrf.mxu0
  %215 = vdwg.mxu0
  %v216 = vtanh.pop %v213
  %v217 = vld [vmem:[%s7] sm:$0xf]
  %219 = vset.pattern.permute.xlu0 0
  %220 = vperm.xlu0 %219, %v217
  %v221 = vpop.permute.xlu0 %220
  %v223 = vmul.f32 %v221, %v216
  %vm224 = vcmask 1043456
  %v225 = vsel %vm224, %v223, 0.0
  %v226 = vrot.slane %v225, 4
  %v227 = vadd.f32 %v225, %v226
  %v228 = vrot.slane %v227, 2
  %v229 = vadd.f32 %v227, %v228
  %v230 = vrot.slane %v229, 1
  %v231 = vadd.f32 %v229, %v230
  %v232 = vld [vmem:[#allocation2] sm:$0x1]
  %234 = vset.pattern.permute.xlu0 0
  %235 = vperm.xlu0 %234, %v232
  %v236 = vpop.permute.xlu0 %235
  %v238 = vperm.slane %v236, 0
  %v239 = vadd.f32 %v231, %v238
  %v240 = vand.u32 2147483647, %v239
  %v241 = vsub.f32 0.0, %v240
  %v242 = vmul.f32 %v241, 1.442695
  %v243 = vpow.pop %v242
  %vm244 = vcmp.ge.f32.partialorder %v239, 0.0
  %v245 = vsel %vm244, 1.0, %v243
  %v246 = vadd.f32 %v243, 1.0
  %v247 = vrcp.pop %v246
  %v248 = vmul.f32 %v245, %v247
  %249 = vst [vmem:[%s9] sm:$0xf] %v216
  %250 = vst [vmem:[%s9 + $0x4] sm:$0x1] %v248
  %251 = vst [vmem:[%s9 + $0x5] sm:$0x7] 0.0
  // Predicated region
  $region38: #{mlp_forward.1} parent=0 // pred_check
    _
  $region39: #{mlp_forward.1} parent=0 // pred_check_branch
    %253 = sbr.rel (0) target = $region41
  $region40: #{mlp_forward.1} parent=0 // pred_region
    _
  $region41: #{mlp_forward.1} parent=0 // pred_fallthru
    _
  // Predicated region
  $region42: #{mlp_forward.1} parent=0 // pred_check
    _
  $region43: #{mlp_forward.1} parent=0 // pred_check_branch
    %255 = sbr.rel (0) target = $region45
  $region44: #{mlp_forward.1} parent=0 // pred_region
    _
  $region45: #{mlp_forward.1} parent=0 // pred_fallthru
    _

</llo_original>
